<compile_context>
chip_gen: v7x
topology: tpu7x:2x2x1
jax: 0.10.0
libtpu: 0.0.40
codegen_flags: <defaults>
</compile_context>

<pallas_src>
import math

import jax
import jax.numpy as jnp
from jax.experimental import pallas as pl
from jax.experimental.pallas import tpu as pltpu

_MIB = 1024 * 1024


# ----------------------------------------------------------------------------
# Sinusoidal positional-encoding table (matches the PyTorch buffer `pe`).
# ----------------------------------------------------------------------------
def _make_pe_table(d_model: int, max_len: int = 5000, dtype=jnp.float32) -> jnp.ndarray:
    position = jnp.arange(max_len, dtype=jnp.float32)[:, None]              # (max_len, 1)
    div_term = jnp.exp(
        jnp.arange(0, d_model, 2, dtype=jnp.float32)
        * (-math.log(10000.0) / d_model)
    )                                                                        # (ceil(d/2),)
    angles = position * div_term                                             # (max_len, ceil(d/2))
    pe = jnp.zeros((max_len, d_model), dtype=jnp.float32)
    pe = pe.at[:, 0::2].set(jnp.sin(angles))
    pe = pe.at[:, 1::2].set(jnp.cos(angles)[:, : d_model // 2])              # safe for odd d_model
    return pe.astype(dtype)


# ----------------------------------------------------------------------------
# Generation-aware tiling / VMEM budgeting.
# ----------------------------------------------------------------------------
def _tpu_generation() -> str:
    try:
        kind = jax.devices()[0].device_kind.lower()
    except Exception:
        return "unknown"
    if "7" in kind:
        return "v7x"
    if "v6" in kind or "6e" in kind:
        return "v6e"
    if "v5e" in kind or "v5 lite" in kind or "v5lite" in kind:
        return "v5e"
    return "unknown"


# Target bytes for one x tile (double-buffered x + out + pe must fit the budget).
_TARGET_TILE_BYTES = {
    "v7x": 8 * _MIB,      # 3.2 TB/s HBM: halve step count, stay under 64 MiB phys VMEM
    "v6e": 4 * _MIB,      # ~85% of HBM roofline measured at ~4 MiB tiles
    "v5e": 2 * _MIB,      # default scoped-VMEM limit is only 16 MiB; 2 MiB tiles ~80-85% roofline
    "unknown": 2 * _MIB,  # conservative
}


def _choose_tiles(B: int, L: int, itemsize: int, target_bytes: int, generation: str):
    """Pick (tB, tL): sublane (batch) tile and lane tile."""
    # Lane tile: full L if it fits the budget, else a multiple of 128.
    if L * itemsize <= target_bytes:
        tL = L
    else:
        tL = max(128, (target_bytes // itemsize) // 128 * 128)
        tL = min(tL, L)

    # Sublane tile: grow in multiples of 8 up to B until the tile hits the budget
    # (no hard tB=8 cap -> fat-batch / thin-sequence shapes still get big tiles).
    rows_by_budget = max(1, target_bytes // (tL * itemsize))
    if B <= 8 or rows_by_budget >= B:
        tB = B                                   # full extent along batch (always legal)
    else:
        tB = min(B, max(8, (rows_by_budget // 8) * 8))   # multiple of 8

    # v7x has 2 TensorCores: make sure a non-trivial tensor yields >= 2 programs
    # along a "parallel" axis so neither core sits idle.
    if generation == "v7x" and B * L * itemsize > 8 * _MIB:
        def n_programs(tb, tl):
            return pl.cdiv(B, tb) * pl.cdiv(L, tl)

        while n_programs(tB, tL) < 2 and tL >= 256:
            tL = max(128, (tL // 2) // 128 * 128)
        if n_programs(tB, tL) < 2 and tB > 8:
            tB = max(8, (((tB + 1) // 2) // 8) * 8)

    return tB, tL


def _vmem_limit_bytes(tB: int, tL: int, itemsize: int) -> int:
    """Scoped-VMEM budget: double-buffered x + out tiles, pe tiles, plus headroom."""
    tile = tB * tL * itemsize
    pe_tile = tL * itemsize
    working = 4 * tile + 2 * pe_tile
    limit = working + max(working, 4 * _MIB)          # generous headroom
    # Floor: at/above v5e's 16 MiB default.  Cap: 48 MiB, safely under v7x's
    # 64 MiB physical VMEM (v5e/v6e have 128 MiB physical, so 48 MiB is fine).
    return int(min(max(limit, 16 * _MIB), 48 * _MIB))


# ----------------------------------------------------------------------------
# Kernel: a single VPU add with a cheap sublane broadcast of pe.
# ----------------------------------------------------------------------------
def _add_pe_kernel(x_ref, pe_ref, o_ref):
    # x_ref / o_ref: (tB, tL); pe_ref: (1, tL) or (1, L).  No reshapes in-kernel.
    o_ref[...] = x_ref[...] + pe_ref[...]


# ----------------------------------------------------------------------------
# Module wrapper (keeps PyTorch forward semantics: x + pe[:, :S, :]).
# ----------------------------------------------------------------------------
class PositionalEncoding:
    def __init__(self, d_model: int, max_len: int = 5000, dtype=jnp.float32):
        self.d_model = int(d_model)
        self.max_len = int(max_len)
        self.dtype = jnp.dtype(dtype)
        # Built once, directly in the model dtype (no per-call f32 -> dtype cast).
        self.pe = _make_pe_table(self.d_model, self.max_len, self.dtype)
        self._pe_flat_cache = {}          # (seq_len, dtype) -> (1, S*D) array
        self._generation = _tpu_generation()

    def _pe_flat(self, seq_len: int, dtype) -> jnp.ndarray:
        key = (seq_len, jnp.dtype(dtype).name)
        pe2 = self._pe_flat_cache.get(key)
        if pe2 is None:
            pe2 = self.pe[:seq_len, :].astype(dtype).reshape(1, seq_len * self.d_model)
            self._pe_flat_cache[key] = pe2
        return pe2

    def __call__(self, x: jnp.ndarray) -> jnp.ndarray:
        B, S, D = x.shape
        assert D == self.d_model, f"d_model mismatch: {D} vs {self.d_model}"
        assert S <= self.max_len, f"seq_len {S} exceeds max_len {self.max_len}"
        L = S * D

        # Lane-dense 2-D views (layout plumbing only; the hot add is in-kernel).
        x2 = x.reshape(B, L)
        pe2 = self._pe_flat(S, x.dtype)

        itemsize = x2.dtype.itemsize
        target = _TARGET_TILE_BYTES.get(self._generation, 2 * _MIB)
        tB, tL = _choose_tiles(B, L, itemsize, target, self._generation)
        n_l = pl.cdiv(L, tL)
        n_b = pl.cdiv(B, tB)

        if tL == L:
            # pe fits in one lane tile: constant block index -> DMA'd exactly once,
            # stays VMEM-resident for the whole grid.
            pe_spec = pl.BlockSpec((1, L), lambda l, b: (0, 0))
        else:
            # Batch innermost: pe's block index (0, l) is constant across consecutive
            # steps, so its tile is not re-fetched from HBM.
            pe_spec = pl.BlockSpec((1, tL), lambda l, b: (0, l))

        out2 = pl.pallas_call(
            _add_pe_kernel,
            out_shape=jax.ShapeDtypeStruct((B, L), x.dtype),
            grid_spec=pltpu.PrefetchScalarGridSpec(
                num_scalar_prefetch=0,
                grid=(n_l, n_b),
                in_specs=[
                    pl.BlockSpec((tB, tL), lambda l, b: (b, l)),
                    pe_spec,
                ],
                out_specs=pl.BlockSpec((tB, tL), lambda l, b: (b, l)),
            ),
            compiler_params=pltpu.CompilerParams(
                dimension_semantics=("parallel", "parallel"),
                vmem_limit_bytes=_vmem_limit_bytes(tB, tL, itemsize),
            ),
            # NOTE: no input_output_aliases.  Aliasing x <-> out only pays off when
            # x is donated (jit(..., donate_argnums=...)); otherwise XLA inserts a
            # defensive full copy of x, roughly doubling HBM traffic.
        )(x2, pe2)

        return out2.reshape(B, S, D)


def positional_encoding_ref(x: jnp.ndarray, pe_table: jnp.ndarray) -> jnp.ndarray:
    """Pure-JAX reference of the PyTorch forward."""
    return x + pe_table[None, : x.shape[1], :].astype(x.dtype)


if __name__ == "__main__":
    max_len = 5000

    # Case 1: small shape consistent with the module's (batch, seq_len, d_model) layout.
    B, S, D = 2, 8, 32
    x = jax.random.normal(jax.random.PRNGKey(0), (B, S, D), dtype=jnp.float32)
    penc = PositionalEncoding(D, max_len=max_len, dtype=jnp.float32)
    out = jax.block_until_ready(penc(x))
    ref = positional_encoding_ref(x, penc.pe)
    assert out.shape == (B, S, D)
    assert jnp.allclose(out, ref, atol=1e-6, rtol=1e-6)

    # Case 2: S*D not a multiple of 128 (full-extent lane block), odd-ish dims.
    B2, S2, D2 = 3, 5, 24
    x_b = jax.random.normal(jax.random.PRNGKey(1), (B2, S2, D2), dtype=jnp.float32)
    penc_b = PositionalEncoding(D2, max_len=max_len, dtype=jnp.float32)
    out_b = jax.block_until_ready(penc_b(x_b))
    ref_b = positional_encoding_ref(x_b, penc_b.pe)
    assert jnp.allclose(out_b, ref_b, atol=1e-6, rtol=1e-6)

    # Case 3: fatter batch (B > 8) + bf16 activations (exercises tB growth and the
    # cached per-(S, dtype) pe slice / cast path).
    B3, S3, D3 = 16, 12, 32
    x_c = jax.random.normal(jax.random.PRNGKey(2), (B3, S3, D3), dtype=jnp.bfloat16)
    penc_c = PositionalEncoding(D3, max_len=max_len, dtype=jnp.float32)
    out_c = jax.block_until_ready(penc_c(x_c))
    ref_c = positional_encoding_ref(x_c, penc_c.pe)
    assert jnp.allclose(out_c.astype(jnp.float32), ref_c.astype(jnp.float32),
                        atol=1e-2, rtol=1e-2)

    print("KERNEL_OK")
</pallas_src>

<mosaic_0001>
module attributes {stable_mosaic.version = 11 : i64} {
  func.func @_add_pe_kernel(%arg0: i32, %arg1: i32, %arg2: memref<2x256xf32, #tpu.memory_space<vmem>>, %arg3: memref<1x256xf32, #tpu.memory_space<vmem>>, %arg4: memref<2x256xf32, #tpu.memory_space<vmem>>) attributes {dimension_semantics = [#tpu.dimension_semantics<parallel>, #tpu.dimension_semantics<parallel>], iteration_bounds = array<i64: 1, 1>, scalar_prefetch = 0 : i64, scratch_operands = 0 : i64, tpu.core_type = #tpu.core_type<tc>, window_params = [{transform_indices = @transform_0, window_bounds = array<i64: 2, 256>}, {pipeline_mode = #tpu.pipeline_mode<synchronous>, transform_indices = @transform_1, window_bounds = array<i64: 1, 256>}, {transform_indices = @transform_2, window_bounds = array<i64: 2, 256>}]} {
    %c0 = arith.constant 0 : index
    %c0_0 = arith.constant 0 : index
    %0 = vector.load %arg2[%c0, %c0_0] : memref<2x256xf32, #tpu.memory_space<vmem>>, vector<2x256xf32>
    %c0_1 = arith.constant 0 : index
    %c0_2 = arith.constant 0 : index
    %1 = vector.load %arg3[%c0_1, %c0_2] : memref<1x256xf32, #tpu.memory_space<vmem>>, vector<1x256xf32>
    %2 = vector.broadcast %1 : vector<1x256xf32> to vector<2x256xf32>
    %3 = arith.addf %0, %2 : vector<2x256xf32>
    %c0_3 = arith.constant 0 : index
    %c0_4 = arith.constant 0 : index
    %4 = vector.load %arg4[%c0_3, %c0_4] : memref<2x256xf32, #tpu.memory_space<vmem>>, vector<2x256xf32>
    tpu.vector_store %arg4[%c0_3, %c0_4], %3 {strides = array<i32>} : memref<2x256xf32, #tpu.memory_space<vmem>>, vector<2x256xf32>,
    return
  }
  func.func @transform_0(%arg0: i32, %arg1: i32) -> (i32, i32) {
    %c0_i32 = arith.constant 0 : i32
    return %arg1, %arg0 : i32, i32
  }
  func.func @transform_1(%arg0: i32, %arg1: i32) -> (i32, i32) {
    %c0_i32 = arith.constant 0 : i32
    %c0_i32_0 = arith.constant 0 : i32
    %c0_i32_1 = arith.constant 0 : i32
    return %c0_i32, %c0_i32_0 : i32, i32
  }
  func.func @transform_2(%arg0: i32, %arg1: i32) -> (i32, i32) {
    %c0_i32 = arith.constant 0 : i32
    return %arg1, %arg0 : i32, i32
  }
}

</mosaic_0001>

<llo_original>
// kernel: tpu_custom_call.1
$region0: #{tpu_custom_call.1}
  #allocation0 [shape = 'u32[]', space=smem, size = 0x4, offset = 0x4, fixed_abs, tag = 'smem constant byte address 0x4 - core index']
  #allocation1 [shape = 'u32[144,128]{1,0:T(1,128)}', space=vmem, size = 0x12000, scoped, tag = 'internal scratch']
  %s0 = inlined_call_operand.hbm [shape: f32[2,256], index: 0, kind: input, shape index: {}]
  %s1 = inlined_call_operand.vmem [shape: f32[1,256], index: 1, kind: input, shape index: {}]
  %s2 = inlined_call_operand.hbm [shape: f32[2,256], index: 2, kind: output, shape index: {}]
  %s3 = sld [smem:[#allocation0]]
  $region22: #{tpu_custom_call.1} parent=0
    _
  %s5 = ssub.s32 1, %s3
  %s6 = scalar_select 0, %s5, %s3
  $region1: #{tpu_custom_call.1} parent=0
    #allocation2 [shape = 'u8[2048]{0}', space=vmem, size = 0x800, scoped, tag = 'input window, operand 0, single buffered']
    #allocation3 [shape = 's32[1]{0}', space=sflag, size = 0x4, scoped, tag = 'scoped memory for tpu_custom_call.1']
    #allocation4 [shape = 's32[1]{0}', space=sflag, size = 0x4, scoped, tag = 'scoped memory for tpu_custom_call.1']
    #allocation5 [shape = 'u8[2048]{0}', space=vmem, size = 0x800, scoped, tag = 'output window, operand 0, single buffered']
    %7 = vsyncpa [#allocation3], 0
    %8 = vsyncpa [#allocation4], 0
    // Predicated region
    $region2: #{tpu_custom_call.1} parent=1 // pred_check
      _
    $region3: #{tpu_custom_call.1} parent=1 // pred_check_branch
      %10 = sbr.rel (0) target = $region5
    $region4: #{tpu_custom_call.1} parent=1 // pred_region
      %s12 = ssub.s32 64, 64
      %13 = vsyncadd [#allocation3], %s12
      %s15 = sshll.u32 [#allocation2], 4
      %s16 = int_to_ptr.vmem [resolvable:$true] %s15
      %18 = dma.hbm_to_vmem [thread:$0]  %s0, 64, %s16, [#allocation3]
    $region5: #{tpu_custom_call.1} parent=1 // pred_fallthru
      _
    // Predicated region
    $region6: #{tpu_custom_call.1} parent=1 // pred_check
      _
    $region7: #{tpu_custom_call.1} parent=1 // pred_check_branch
      %20 = sbr.rel (0) target = $region9
    $region8: #{tpu_custom_call.1} parent=1 // pred_region
      _
    $region9: #{tpu_custom_call.1} parent=1 // pred_fallthru
      _
    // Predicated region
    $region10: #{tpu_custom_call.1} parent=1 // pred_check
      _
    $region11: #{tpu_custom_call.1} parent=1 // pred_check_branch
      %22 = sbr.rel (0) target = $region13
    $region12: #{tpu_custom_call.1} parent=1 // pred_region
      %23 = dma.done [#allocation3], 64
    $region13: #{tpu_custom_call.1} parent=1 // pred_fallthru
      _
    %v24 = vld [vmem:[#allocation2] sm:$0xf]
    %v25 = vld [vmem:[%s1] sm:$0x3]
    %v27 = vlaneseq
    %v28 = vshrl.u32 %v27, 7
    %v29 = vsub.s32 0, %v28
    %v30 = vrot.slane %v25, %v29
    %v31 = vlaneseq
    %v32 = vshrl.u32 %v31, 7
    %v33 = vsub.s32 1, %v32
    %v34 = vrot.slane %v25, %v33
    %v35 = vcombine.low %v30, %v34
    %v37 = vunpack.c.l.s4 1983009808
    %v38 = vunpack.c.0.s8 %v37
    %v39 = vlaneseq
    %v40 = vshrl.u32 %v39, 7
    %v41 = vsub.s32 %v38, %v40
    %v42 = vrot.slane %v35, %v41
    %v44 = vadd.f32 %v24, %v42
    %45 = vst [vmem:[#allocation5] sm:$0xf] %v44
    // Predicated region
    $region14: #{tpu_custom_call.1} parent=1 // pred_check
      _
    $region15: #{tpu_custom_call.1} parent=1 // pred_check_branch
      %47 = sbr.rel (0) target = $region17
    $region16: #{tpu_custom_call.1} parent=1 // pred_region
      %s49 = ssub.s32 64, 64
      %50 = vsyncadd [#allocation4], %s49
      %s52 = sshll.u32 [#allocation5], 4
      %s53 = int_to_ptr.vmem [resolvable:$true] %s52
      %55 = dma.vmem_to_hbm [thread:$0]  %s53, 64, %s2, [#allocation4]
    $region17: #{tpu_custom_call.1} parent=1 // pred_fallthru
      _
    // Predicated region
    $region18: #{tpu_custom_call.1} parent=1 // pred_check
      _
    $region19: #{tpu_custom_call.1} parent=1 // pred_check_branch
      %57 = sbr.rel (0) target = $region21
    $region20: #{tpu_custom_call.1} parent=1 // pred_region
      %58 = dma.done [#allocation4], 64
    $region21: #{tpu_custom_call.1} parent=1 // pred_fallthru
      _
    %59 = vsyncpa [#allocation3], 1
    %60 = vsyncpa [#allocation4], 1

</llo_original>
